<compile_context>
chip_gen: v7x
topology: tpu7x:2x2x1
jax: 0.10.0
libtpu: 0.0.40
codegen_flags: <defaults>
</compile_context>

<pallas_src>
import jax
import jax.numpy as jnp
from jax.experimental import pallas as pl
from jax.experimental.pallas import tpu as pltpu


def _mlp_kernel(pots_ref, dealer_ref, bb_ref, sb_ref,
                w1p_ref, w1d_ref, w1bb_ref, w1sb_ref, b1_ref,
                w2_ref, b2_ref, o_ref):
    """Feature-major 2-layer MLP tile: batch rides the lane axis.

    pots/dealer: [P, TB] bf16    bb/sb:        [1, TB] f32
    w1p/w1d:     [H, P]  bf16    w1bb/w1sb/b1: [H, 1]  f32
    w2:          [P, H]  f32     b2:           [P, 1]  f32
    o:           [P, TB] f32
    """
    # Layer 1: h = W1^T x, with the concat fused into separate contributions.
    h = jnp.dot(w1p_ref[...], pots_ref[...], preferred_element_type=jnp.float32)
    h = h + jnp.dot(w1d_ref[...], dealer_ref[...],
                    preferred_element_type=jnp.float32)
    h = h + w1bb_ref[...] * bb_ref[...]      # [H,1] * [1,TB] outer product (VPU)
    h = h + w1sb_ref[...] * sb_ref[...]
    h = h + b1_ref[...]                      # bias broadcast over lanes (f32)
    h = jnp.maximum(h, 0.0)                  # ReLU in f32 on the VPU
    # Layer 2: tiny K=H contraction; result tile is lane-dense [P, TB].
    o = jnp.dot(w2_ref[...], h, preferred_element_type=jnp.float32)
    o_ref[...] = (o + b2_ref[...]).astype(o_ref.dtype)


def target_model_forward(params, pots, dealer_tensor, big_blind_size,
                         small_blind_size, *, tb_max=4096):
    """Matches TargetModel.forward semantics.

    pots:             [B, P]
    dealer_tensor:    [B, P]
    big_blind_size:   [B]
    small_blind_size: [B]
    returns scores:   [B, P] float32
    """
    w1, b1, w2, b2 = params                 # [2P+2,H], [1,H], [H,P], [1,P]
    B, P = pots.shape
    H = w1.shape[1]

    # Split / transpose the weights for the fused-concat, feature-major form.
    w1p_t = w1[:P, :].T.astype(jnp.bfloat16)              # [H, P]
    w1d_t = w1[P:2 * P, :].T.astype(jnp.bfloat16)         # [H, P]
    w1bb = w1[2 * P, :].reshape(H, 1).astype(jnp.float32)  # [H, 1]
    w1sb = w1[2 * P + 1, :].reshape(H, 1).astype(jnp.float32)
    b1c = b1.reshape(H, 1).astype(jnp.float32)
    w2_t = w2.T.astype(jnp.float32)                        # [P, H]
    b2c = b2.reshape(P, 1).astype(jnp.float32)

    # Batch tiling: lane-dense tiles (multiple of 128), small enough for v7x VMEM.
    b_pad = pl.cdiv(B, 128) * 128
    if b_pad > tb_max:
        tb = tb_max
        b_pad = pl.cdiv(B, tb) * tb
    else:
        tb = b_pad
    grid = (b_pad // tb,)
    pad = b_pad - B

    # Feature-major activations: batch on the last (lane) axis.
    # (Transpose/cast/pad are wrapper-side layout plumbing, fused by XLA.)
    pots_t = jnp.pad(pots.T.astype(jnp.bfloat16), ((0, 0), (0, pad)))
    dealer_t = jnp.pad(dealer_tensor.T.astype(jnp.bfloat16), ((0, 0), (0, pad)))
    bb = jnp.pad(big_blind_size.astype(jnp.float32).reshape(1, B),
                 ((0, 0), (0, pad)))
    sb = jnp.pad(small_blind_size.astype(jnp.float32).reshape(1, B),
                 ((0, 0), (0, pad)))

    act_spec = pl.BlockSpec((P, tb), lambda i: (0, i))
    row_spec = pl.BlockSpec((1, tb), lambda i: (0, i))

    out_t = pl.pallas_call(
        _mlp_kernel,
        out_shape=jax.ShapeDtypeStruct((P, b_pad), jnp.float32),
        grid=grid,
        in_specs=[
            act_spec,                                    # pots_t   [P, B_pad]
            act_spec,                                    # dealer_t [P, B_pad]
            row_spec,                                    # bb       [1, B_pad]
            row_spec,                                    # sb       [1, B_pad]
            pl.BlockSpec((H, P), lambda i: (0, 0)),      # w1p_t (VMEM-resident)
            pl.BlockSpec((H, P), lambda i: (0, 0)),      # w1d_t
            pl.BlockSpec((H, 1), lambda i: (0, 0)),      # w1bb
            pl.BlockSpec((H, 1), lambda i: (0, 0)),      # w1sb
            pl.BlockSpec((H, 1), lambda i: (0, 0)),      # b1
            pl.BlockSpec((P, H), lambda i: (0, 0)),      # w2_t
            pl.BlockSpec((P, 1), lambda i: (0, 0)),      # b2
        ],
        out_specs=pl.BlockSpec((P, tb), lambda i: (0, i)),
        compiler_params=pltpu.CompilerParams(
            dimension_semantics=("parallel",)),
    )(pots_t, dealer_t, bb, sb, w1p_t, w1d_t, w1bb, w1sb, b1c, w2_t, b2c)

    # Back to the module's [B, P] output layout; drop batch padding.
    return out_t[:, :B].T


def init_params(key, num_players):
    """Deterministic init mirroring nn.Linear default (U(-1/sqrt(fan_in), +))."""
    d_in = num_players * 2 + 2
    H = 16
    d_out = num_players
    k1, k2, k3, k4 = jax.random.split(key, 4)
    lim1 = 1.0 / jnp.sqrt(d_in)
    lim2 = 1.0 / jnp.sqrt(H)
    w1 = jax.random.uniform(k1, (d_in, H), jnp.float32, -lim1, lim1)
    b1 = jax.random.uniform(k2, (1, H), jnp.float32, -lim1, lim1)
    w2 = jax.random.uniform(k3, (H, d_out), jnp.float32, -lim2, lim2)
    b2 = jax.random.uniform(k4, (1, d_out), jnp.float32, -lim2, lim2)
    return (w1, b1, w2, b2)


def _ref_f32(params, pots, dealer, bb, sb):
    """Exact spec reference (pure f32, HIGHEST precision dots)."""
    w1, b1, w2, b2 = params
    blind = jnp.stack([bb, sb]).transpose(1, 0)
    x = jnp.concatenate([pots, dealer, blind], axis=1)
    hp = jax.lax.Precision.HIGHEST
    h = jnp.maximum(jnp.dot(x, w1, precision=hp) + b1, 0.0)
    return jnp.dot(h, w2, precision=hp) + b2


def _ref_matched(params, pots, dealer, bb, sb):
    """Reference mirroring the kernel's mixed precision (bf16 layer-1 operands)."""
    w1, b1, w2, b2 = params
    P = pots.shape[1]
    hp = jax.lax.Precision.HIGHEST
    h = jnp.dot(pots.astype(jnp.bfloat16), w1[:P].astype(jnp.bfloat16),
                preferred_element_type=jnp.float32)
    h = h + jnp.dot(dealer.astype(jnp.bfloat16),
                    w1[P:2 * P].astype(jnp.bfloat16),
                    preferred_element_type=jnp.float32)
    h = h + bb[:, None] * w1[2 * P][None, :]
    h = h + sb[:, None] * w1[2 * P + 1][None, :]
    h = jnp.maximum(h + b1, 0.0)
    return jnp.dot(h, w2, precision=hp) + b2


if __name__ == "__main__":
    num_players = 4
    key = jax.random.PRNGKey(0)
    kp, kx1, kx2, kx3, kx4 = jax.random.split(key, 5)
    params = init_params(kp, num_players)

    # --- small-shape check (single grid step) ---
    batch = 8
    pots = jax.random.normal(kx1, (batch, num_players), jnp.float32)
    dealer = jax.random.normal(kx2, (batch, num_players), jnp.float32)
    bb = jax.random.normal(kx3, (batch,), jnp.float32)
    sb = jax.random.normal(kx4, (batch,), jnp.float32)

    scores = target_model_forward(params, pots, dealer, bb, sb)
    jax.block_until_ready(scores)
    assert scores.shape == (batch, num_players)
    assert jnp.allclose(scores, _ref_f32(params, pots, dealer, bb, sb),
                        atol=5e-2, rtol=5e-2)          # bf16 layer-1 inputs
    assert jnp.allclose(scores, _ref_matched(params, pots, dealer, bb, sb),
                        atol=5e-3, rtol=5e-3)          # same precision path

    # --- multi-tile check (exercises the batch grid with tiny tiles) ---
    batch2 = 300
    kx5, kx6, kx7, kx8 = jax.random.split(jax.random.PRNGKey(1), 4)
    pots2 = jax.random.normal(kx5, (batch2, num_players), jnp.float32)
    dealer2 = jax.random.normal(kx6, (batch2, num_players), jnp.float32)
    bb2 = jax.random.normal(kx7, (batch2,), jnp.float32)
    sb2 = jax.random.normal(kx8, (batch2,), jnp.float32)
    scores2 = target_model_forward(params, pots2, dealer2, bb2, sb2, tb_max=128)
    jax.block_until_ready(scores2)
    assert scores2.shape == (batch2, num_players)
    assert jnp.allclose(scores2, _ref_f32(params, pots2, dealer2, bb2, sb2),
                        atol=5e-2, rtol=5e-2)
    assert jnp.allclose(scores2, _ref_matched(params, pots2, dealer2, bb2, sb2),
                        atol=5e-3, rtol=5e-3)

    print("KERNEL_OK")
</pallas_src>

<mosaic_0001>
module attributes {stable_mosaic.version = 11 : i64} {
  func.func @_mlp_kernel(%arg0: i32, %arg1: memref<4x128xbf16, #tpu.memory_space<vmem>>, %arg2: memref<4x128xbf16, #tpu.memory_space<vmem>>, %arg3: memref<1x128xf32, #tpu.memory_space<vmem>>, %arg4: memref<1x128xf32, #tpu.memory_space<vmem>>, %arg5: memref<16x4xbf16, #tpu.memory_space<vmem>>, %arg6: memref<16x4xbf16, #tpu.memory_space<vmem>>, %arg7: memref<16x1xf32, #tpu.memory_space<vmem>>, %arg8: memref<16x1xf32, #tpu.memory_space<vmem>>, %arg9: memref<16x1xf32, #tpu.memory_space<vmem>>, %arg10: memref<4x16xf32, #tpu.memory_space<vmem>>, %arg11: memref<4x1xf32, #tpu.memory_space<vmem>>, %arg12: memref<4x128xf32, #tpu.memory_space<vmem>>) attributes {dimension_semantics = [#tpu.dimension_semantics<parallel>], iteration_bounds = array<i64: 1>, scalar_prefetch = 0 : i64, scratch_operands = 0 : i64, tpu.core_type = #tpu.core_type<tc>, window_params = [{transform_indices = @transform_0, window_bounds = array<i64: 4, 128>}, {transform_indices = @transform_1, window_bounds = array<i64: 4, 128>}, {transform_indices = @transform_2, window_bounds = array<i64: 1, 128>}, {transform_indices = @transform_3, window_bounds = array<i64: 1, 128>}, {pipeline_mode = #tpu.pipeline_mode<synchronous>, transform_indices = @transform_4, window_bounds = array<i64: 16, 4>}, {pipeline_mode = #tpu.pipeline_mode<synchronous>, transform_indices = @transform_5, window_bounds = array<i64: 16, 4>}, {pipeline_mode = #tpu.pipeline_mode<synchronous>, transform_indices = @transform_6, window_bounds = array<i64: 16, 1>}, {pipeline_mode = #tpu.pipeline_mode<synchronous>, transform_indices = @transform_7, window_bounds = array<i64: 16, 1>}, {pipeline_mode = #tpu.pipeline_mode<synchronous>, transform_indices = @transform_8, window_bounds = array<i64: 16, 1>}, {pipeline_mode = #tpu.pipeline_mode<synchronous>, transform_indices = @transform_9, window_bounds = array<i64: 4, 16>}, {pipeline_mode = #tpu.pipeline_mode<synchronous>, transform_indices = @transform_10, window_bounds = array<i64: 4, 1>}, {transform_indices = @transform_11, window_bounds = array<i64: 4, 128>}]} {
    %c0 = arith.constant 0 : index
    %c0_0 = arith.constant 0 : index
    %0 = vector.load %arg5[%c0, %c0_0] : memref<16x4xbf16, #tpu.memory_space<vmem>>, vector<16x4xbf16>
    %c0_1 = arith.constant 0 : index
    %c0_2 = arith.constant 0 : index
    %1 = vector.load %arg1[%c0_1, %c0_2] : memref<4x128xbf16, #tpu.memory_space<vmem>>, vector<4x128xbf16>
    %cst = arith.constant dense<0.000000e+00> : vector<16x128xf32>
    %2 = tpu.matmul %0, %1, %cst {dimension_numbers = #tpu.dot_dimension_numbers<[1], [0], [0], [1], [0, 0, 1, 1], [], []>} : vector<16x4xbf16>, vector<4x128xbf16>, vector<16x128xf32> -> vector<16x128xf32>
    %c0_3 = arith.constant 0 : index
    %c0_4 = arith.constant 0 : index
    %3 = vector.load %arg6[%c0_3, %c0_4] : memref<16x4xbf16, #tpu.memory_space<vmem>>, vector<16x4xbf16>
    %c0_5 = arith.constant 0 : index
    %c0_6 = arith.constant 0 : index
    %4 = vector.load %arg2[%c0_5, %c0_6] : memref<4x128xbf16, #tpu.memory_space<vmem>>, vector<4x128xbf16>
    %cst_7 = arith.constant dense<0.000000e+00> : vector<16x128xf32>
    %5 = tpu.matmul %3, %4, %cst_7 {dimension_numbers = #tpu.dot_dimension_numbers<[1], [0], [0], [1], [0, 0, 1, 1], [], []>} : vector<16x4xbf16>, vector<4x128xbf16>, vector<16x128xf32> -> vector<16x128xf32>
    %6 = arith.addf %2, %5 : vector<16x128xf32>
    %c0_8 = arith.constant 0 : index
    %c0_9 = arith.constant 0 : index
    %7 = vector.load %arg7[%c0_8, %c0_9] : memref<16x1xf32, #tpu.memory_space<vmem>>, vector<16x1xf32>
    %c0_10 = arith.constant 0 : index
    %c0_11 = arith.constant 0 : index
    %8 = vector.load %arg3[%c0_10, %c0_11] : memref<1x128xf32, #tpu.memory_space<vmem>>, vector<1x128xf32>
    %9 = vector.broadcast %7 : vector<16x1xf32> to vector<16x128xf32>
    %10 = vector.broadcast %8 : vector<1x128xf32> to vector<16x128xf32>
    %11 = arith.mulf %9, %10 : vector<16x128xf32>
    %12 = arith.addf %6, %11 : vector<16x128xf32>
    %c0_12 = arith.constant 0 : index
    %c0_13 = arith.constant 0 : index
    %13 = vector.load %arg8[%c0_12, %c0_13] : memref<16x1xf32, #tpu.memory_space<vmem>>, vector<16x1xf32>
    %c0_14 = arith.constant 0 : index
    %c0_15 = arith.constant 0 : index
    %14 = vector.load %arg4[%c0_14, %c0_15] : memref<1x128xf32, #tpu.memory_space<vmem>>, vector<1x128xf32>
    %15 = vector.broadcast %13 : vector<16x1xf32> to vector<16x128xf32>
    %16 = vector.broadcast %14 : vector<1x128xf32> to vector<16x128xf32>
    %17 = arith.mulf %15, %16 : vector<16x128xf32>
    %18 = arith.addf %12, %17 : vector<16x128xf32>
    %c0_16 = arith.constant 0 : index
    %c0_17 = arith.constant 0 : index
    %19 = vector.load %arg9[%c0_16, %c0_17] : memref<16x1xf32, #tpu.memory_space<vmem>>, vector<16x1xf32>
    %20 = vector.broadcast %19 : vector<16x1xf32> to vector<16x128xf32>
    %21 = arith.addf %18, %20 : vector<16x128xf32>
    %cst_18 = arith.constant 0.000000e+00 : f32
    %22 = vector.broadcast %cst_18 : f32 to vector<16x128xf32>
    %23 = arith.maximumf %21, %22 : vector<16x128xf32>
    %c0_19 = arith.constant 0 : index
    %c0_20 = arith.constant 0 : index
    %24 = vector.load %arg10[%c0_19, %c0_20] : memref<4x16xf32, #tpu.memory_space<vmem>>, vector<4x16xf32>
    %cst_21 = arith.constant dense<0.000000e+00> : vector<4x128xf32>
    %25 = tpu.matmul %24, %23, %cst_21 {dimension_numbers = #tpu.dot_dimension_numbers<[1], [0], [0], [1], [0, 0, 1, 1], [], []>} : vector<4x16xf32>, vector<16x128xf32>, vector<4x128xf32> -> vector<4x128xf32>
    %c0_22 = arith.constant 0 : index
    %c0_23 = arith.constant 0 : index
    %26 = vector.load %arg11[%c0_22, %c0_23] : memref<4x1xf32, #tpu.memory_space<vmem>>, vector<4x1xf32>
    %27 = vector.broadcast %26 : vector<4x1xf32> to vector<4x128xf32>
    %28 = arith.addf %25, %27 : vector<4x128xf32>
    %c0_24 = arith.constant 0 : index
    %c0_25 = arith.constant 0 : index
    %29 = vector.load %arg12[%c0_24, %c0_25] : memref<4x128xf32, #tpu.memory_space<vmem>>, vector<4x128xf32>
    tpu.vector_store %arg12[%c0_24, %c0_25], %28 {strides = array<i32>} : memref<4x128xf32, #tpu.memory_space<vmem>>, vector<4x128xf32>,
    return
  }
  func.func @transform_0(%arg0: i32) -> (i32, i32) {
    %c0_i32 = arith.constant 0 : i32
    %c0_i32_0 = arith.constant 0 : i32
    return %c0_i32, %arg0 : i32, i32
  }
  func.func @transform_1(%arg0: i32) -> (i32, i32) {
    %c0_i32 = arith.constant 0 : i32
    %c0_i32_0 = arith.constant 0 : i32
    return %c0_i32, %arg0 : i32, i32
  }
  func.func @transform_2(%arg0: i32) -> (i32, i32) {
    %c0_i32 = arith.constant 0 : i32
    %c0_i32_0 = arith.constant 0 : i32
    return %c0_i32, %arg0 : i32, i32
  }
  func.func @transform_3(%arg0: i32) -> (i32, i32) {
    %c0_i32 = arith.constant 0 : i32
    %c0_i32_0 = arith.constant 0 : i32
    return %c0_i32, %arg0 : i32, i32
  }
  func.func @transform_4(%arg0: i32) -> (i32, i32) {
    %c0_i32 = arith.constant 0 : i32
    %c0_i32_0 = arith.constant 0 : i32
    %c0_i32_1 = arith.constant 0 : i32
    return %c0_i32, %c0_i32_0 : i32, i32
  }
  func.func @transform_5(%arg0: i32) -> (i32, i32) {
    %c0_i32 = arith.constant 0 : i32
    %c0_i32_0 = arith.constant 0 : i32
    %c0_i32_1 = arith.constant 0 : i32
    return %c0_i32, %c0_i32_0 : i32, i32
  }
  func.func @transform_6(%arg0: i32) -> (i32, i32) {
    %c0_i32 = arith.constant 0 : i32
    %c0_i32_0 = arith.constant 0 : i32
    %c0_i32_1 = arith.constant 0 : i32
    return %c0_i32, %c0_i32_0 : i32, i32
  }
  func.func @transform_7(%arg0: i32) -> (i32, i32) {
    %c0_i32 = arith.constant 0 : i32
    %c0_i32_0 = arith.constant 0 : i32
    %c0_i32_1 = arith.constant 0 : i32
    return %c0_i32, %c0_i32_0 : i32, i32
  }
  func.func @transform_8(%arg0: i32) -> (i32, i32) {
    %c0_i32 = arith.constant 0 : i32
    %c0_i32_0 = arith.constant 0 : i32
    %c0_i32_1 = arith.constant 0 : i32
    return %c0_i32, %c0_i32_0 : i32, i32
  }
  func.func @transform_9(%arg0: i32) -> (i32, i32) {
    %c0_i32 = arith.constant 0 : i32
    %c0_i32_0 = arith.constant 0 : i32
    %c0_i32_1 = arith.constant 0 : i32
    return %c0_i32, %c0_i32_0 : i32, i32
  }
  func.func @transform_10(%arg0: i32) -> (i32, i32) {
    %c0_i32 = arith.constant 0 : i32
    %c0_i32_0 = arith.constant 0 : i32
    %c0_i32_1 = arith.constant 0 : i32
    return %c0_i32, %c0_i32_0 : i32, i32
  }
  func.func @transform_11(%arg0: i32) -> (i32, i32) {
    %c0_i32 = arith.constant 0 : i32
    %c0_i32_0 = arith.constant 0 : i32
    return %c0_i32, %arg0 : i32, i32
  }
}

</mosaic_0001>

<llo_original>
// kernel: tpu_custom_call.1
$region0: #{tpu_custom_call.1}
  #allocation0 [shape = 'u32[]', space=smem, size = 0x4, offset = 0x4, fixed_abs, tag = 'smem constant byte address 0x4 - core index']
  #allocation1 [shape = 'u32[144,128]{1,0:T(1,128)}', space=vmem, size = 0x12000, scoped, tag = 'internal scratch']
  %s0 = inlined_call_operand.vmem [shape: bf16[4,128], index: 0, kind: input, shape index: {}]
  %s1 = inlined_call_operand.vmem [shape: bf16[4,128], index: 1, kind: input, shape index: {}]
  %s2 = inlined_call_operand.vmem [shape: f32[1,128], index: 2, kind: input, shape index: {}]
  %s3 = inlined_call_operand.vmem [shape: f32[1,128], index: 3, kind: input, shape index: {}]
  %s4 = inlined_call_operand.vmem [shape: bf16[16,4], index: 4, kind: input, shape index: {}]
  %s5 = inlined_call_operand.vmem [shape: bf16[16,4], index: 5, kind: input, shape index: {}]
  %s6 = inlined_call_operand.vmem [shape: f32[16,1], index: 6, kind: input, shape index: {}]
  %s7 = inlined_call_operand.vmem [shape: f32[16,1], index: 7, kind: input, shape index: {}]
  %s8 = inlined_call_operand.vmem [shape: f32[16,1], index: 8, kind: input, shape index: {}]
  %s9 = inlined_call_operand.vmem [shape: f32[4,16], index: 9, kind: input, shape index: {}]
  %s10 = inlined_call_operand.vmem [shape: f32[4,1], index: 10, kind: input, shape index: {}]
  %s11 = inlined_call_operand.hbm [shape: f32[4,128], index: 11, kind: output, shape index: {}]
  %s12 = sld [smem:[#allocation0]]
  $region54: #{tpu_custom_call.1} parent=0
    _
  %s14 = ssub.s32 1, %s12
  %s15 = scalar_select 0, %s14, %s12
  $region1: #{tpu_custom_call.1} parent=0
    #allocation2 [shape = 'u8[2048]{0}', space=vmem, size = 0x800, scoped, tag = 'output window, operand 0, single buffered']
    #allocation3 [shape = 's32[1]{0}', space=sflag, size = 0x4, scoped, tag = 'scoped memory for tpu_custom_call.1']
    %16 = vsyncpa [#allocation3], 0
    // Predicated region
    $region2: #{tpu_custom_call.1} parent=1 // pred_check
      _
    $region3: #{tpu_custom_call.1} parent=1 // pred_check_branch
      %18 = sbr.rel (0) target = $region5
    $region4: #{tpu_custom_call.1} parent=1 // pred_region
      _
    $region5: #{tpu_custom_call.1} parent=1 // pred_fallthru
      _
    // Predicated region
    $region6: #{tpu_custom_call.1} parent=1 // pred_check
      _
    $region7: #{tpu_custom_call.1} parent=1 // pred_check_branch
      %20 = sbr.rel (0) target = $region9
    $region8: #{tpu_custom_call.1} parent=1 // pred_region
      _
    $region9: #{tpu_custom_call.1} parent=1 // pred_fallthru
      _
    // Predicated region
    $region10: #{tpu_custom_call.1} parent=1 // pred_check
      _
    $region11: #{tpu_custom_call.1} parent=1 // pred_check_branch
      %22 = sbr.rel (0) target = $region13
    $region12: #{tpu_custom_call.1} parent=1 // pred_region
      _
    $region13: #{tpu_custom_call.1} parent=1 // pred_fallthru
      _
    // Predicated region
    $region14: #{tpu_custom_call.1} parent=1 // pred_check
      _
    $region15: #{tpu_custom_call.1} parent=1 // pred_check_branch
      %24 = sbr.rel (0) target = $region17
    $region16: #{tpu_custom_call.1} parent=1 // pred_region
      _
    $region17: #{tpu_custom_call.1} parent=1 // pred_fallthru
      _
    // Predicated region
    $region18: #{tpu_custom_call.1} parent=1 // pred_check
      _
    $region19: #{tpu_custom_call.1} parent=1 // pred_check_branch
      %26 = sbr.rel (0) target = $region21
    $region20: #{tpu_custom_call.1} parent=1 // pred_region
      _
    $region21: #{tpu_custom_call.1} parent=1 // pred_fallthru
      _
    // Predicated region
    $region22: #{tpu_custom_call.1} parent=1 // pred_check
      _
    $region23: #{tpu_custom_call.1} parent=1 // pred_check_branch
      %28 = sbr.rel (0) target = $region25
    $region24: #{tpu_custom_call.1} parent=1 // pred_region
      _
    $region25: #{tpu_custom_call.1} parent=1 // pred_fallthru
      _
    // Predicated region
    $region26: #{tpu_custom_call.1} parent=1 // pred_check
      _
    $region27: #{tpu_custom_call.1} parent=1 // pred_check_branch
      %30 = sbr.rel (0) target = $region29
    $region28: #{tpu_custom_call.1} parent=1 // pred_region
      _
    $region29: #{tpu_custom_call.1} parent=1 // pred_fallthru
      _
    // Predicated region
    $region30: #{tpu_custom_call.1} parent=1 // pred_check
      _
    $region31: #{tpu_custom_call.1} parent=1 // pred_check_branch
      %32 = sbr.rel (0) target = $region33
    $region32: #{tpu_custom_call.1} parent=1 // pred_region
      _
    $region33: #{tpu_custom_call.1} parent=1 // pred_fallthru
      _
    // Predicated region
    $region34: #{tpu_custom_call.1} parent=1 // pred_check
      _
    $region35: #{tpu_custom_call.1} parent=1 // pred_check_branch
      %34 = sbr.rel (0) target = $region37
    $region36: #{tpu_custom_call.1} parent=1 // pred_region
      _
    $region37: #{tpu_custom_call.1} parent=1 // pred_fallthru
      _
    // Predicated region
    $region38: #{tpu_custom_call.1} parent=1 // pred_check
      _
    $region39: #{tpu_custom_call.1} parent=1 // pred_check_branch
      %36 = sbr.rel (0) target = $region41
    $region40: #{tpu_custom_call.1} parent=1 // pred_region
      _
    $region41: #{tpu_custom_call.1} parent=1 // pred_fallthru
      _
    // Predicated region
    $region42: #{tpu_custom_call.1} parent=1 // pred_check
      _
    $region43: #{tpu_custom_call.1} parent=1 // pred_check_branch
      %38 = sbr.rel (0) target = $region45
    $region44: #{tpu_custom_call.1} parent=1 // pred_region
      _
    $region45: #{tpu_custom_call.1} parent=1 // pred_fallthru
      _
    %v40 = vld [vmem:[%s4] sm:$0xf]
    %v41 = vld [vmem:[%s4 + $0x4] sm:$0xf]
    %v42 = vld [vmem:[%s0] sm:$0x3]
    %v43 = vld [vmem:[%s5] sm:$0xf]
    %v44 = vld [vmem:[%s5 + $0x4] sm:$0xf]
    %v45 = vld [vmem:[%s1] sm:$0x3]
    %v48 = vunpack.c.l.b16 %v43
    %v49 = vunpack.c.l.b16 %v44
    %v50 = vpack.c.b16 %v49, %v48
    %vm51 = vcmask 31744
    %v53 = vsel %vm51, %v50, 0
    %vm55 = vcmask 1041408
    %v57 = vsel %vm55, %v45, 0
    %59 = vmatprep.subr.bf16.mxu0 0
    %60 = vmatpush1.bf16.msra.mxu0 %v57
    %61 = vmatprep.subr.bf16.mxu0 0
    %62 = vmatpush1.bf16.msra.mxu0 0
    %63 = vmatprep.subr.bf16.mxu0 0
    %64 = vmatpush1.bf16.msra.mxu0 0
    %65 = vmatprep.subr.bf16.mxu0 0
    %66 = vmatpush1.bf16.msra.mxu0 0
    %67 = vmatprep.subr.bf16.mxu0 0
    %68 = vmatpush1.bf16.msra.mxu0 0
    %69 = vmatprep.subr.bf16.mxu0 0
    %70 = vmatpush1.bf16.msra.mxu0 0
    %71 = vmatprep.subr.bf16.mxu0 0
    %72 = vmatpush1.bf16.msra.mxu0 0
    %73 = vmatprep.subr.bf16.mxu0 0
    %74 = vmatpush1.bf16.msra.mxu0 0
    %75 = vmatprep.subr.bf16.mxu0 0
    %76 = vmatpush1.bf16.msra.mxu0 0
    %77 = vmatprep.subr.bf16.mxu0 0
    %78 = vmatpush1.bf16.msra.mxu0 0
    %79 = vmatprep.subr.bf16.mxu0 0
    %80 = vmatpush1.bf16.msra.mxu0 0
    %81 = vmatprep.subr.bf16.mxu0 0
    %82 = vmatpush1.bf16.msra.mxu0 0
    %83 = vmatprep.subr.bf16.mxu0 0
    %84 = vmatpush1.bf16.msra.mxu0 0
    %85 = vmatprep.subr.bf16.mxu0 0
    %86 = vmatpush1.bf16.msra.mxu0 0
    %87 = vmatprep.subr.bf16.mxu0 0
    %88 = vmatpush1.bf16.msra.mxu0 0
    %89 = vmatprep.subr.bf16.mxu0 0
    %90 = vmatpush1.bf16.msra.mxu0 0
    %91 = vmatprep.mubr.bf16.mxu0 0
    %92 = vmatmul.mubr.bf16.gmra.mrb[0].mxu0 %v53
    %v93 = vpop.f32.mrb[0].mxu0
    %v94 = vadd.f32 0.0, %v93
    %v95 = vpop.f32.mrb[0].mxu0
    %v96 = vpop.f32.mrb[0].mxu0
    %v97 = vadd.f32 0.0, %v96
    %v98 = vpop.f32.mrb[0].mxu0
    %99 = vdwg.mxu0
    %v102 = vunpack.c.l.b16 %v40
    %v103 = vunpack.c.l.b16 %v41
    %v104 = vpack.c.b16 %v103, %v102
    %v106 = vsel %vm51, %v104, 0
    %v109 = vsel %vm55, %v42, 0
    %111 = vmatprep.subr.bf16.mxu0 0
    %112 = vmatpush1.bf16.msra.mxu0 %v109
    %113 = vmatprep.subr.bf16.mxu0 0
    %114 = vmatpush1.bf16.msra.mxu0 0
    %115 = vmatprep.subr.bf16.mxu0 0
    %116 = vmatpush1.bf16.msra.mxu0 0
    %117 = vmatprep.subr.bf16.mxu0 0
    %118 = vmatpush1.bf16.msra.mxu0 0
    %119 = vmatprep.subr.bf16.mxu0 0
    %120 = vmatpush1.bf16.msra.mxu0 0
    %121 = vmatprep.subr.bf16.mxu0 0
    %122 = vmatpush1.bf16.msra.mxu0 0
    %123 = vmatprep.subr.bf16.mxu0 0
    %124 = vmatpush1.bf16.msra.mxu0 0
    %125 = vmatprep.subr.bf16.mxu0 0
    %126 = vmatpush1.bf16.msra.mxu0 0
    %127 = vmatprep.subr.bf16.mxu0 0
    %128 = vmatpush1.bf16.msra.mxu0 0
    %129 = vmatprep.subr.bf16.mxu0 0
    %130 = vmatpush1.bf16.msra.mxu0 0
    %131 = vmatprep.subr.bf16.mxu0 0
    %132 = vmatpush1.bf16.msra.mxu0 0
    %133 = vmatprep.subr.bf16.mxu0 0
    %134 = vmatpush1.bf16.msra.mxu0 0
    %135 = vmatprep.subr.bf16.mxu0 0
    %136 = vmatpush1.bf16.msra.mxu0 0
    %137 = vmatprep.subr.bf16.mxu0 0
    %138 = vmatpush1.bf16.msra.mxu0 0
    %139 = vmatprep.subr.bf16.mxu0 0
    %140 = vmatpush1.bf16.msra.mxu0 0
    %141 = vmatprep.subr.bf16.mxu0 0
    %142 = vmatpush1.bf16.msra.mxu0 0
    %143 = vmatprep.mubr.bf16.mxu0 0
    %144 = vmatmul.mubr.bf16.gmra.mrb[0].mxu0 %v106
    %v145 = vpop.f32.mrb[0].mxu0
    %v146 = vadd.f32 %v94, %v145
    %v147 = vpop.f32.mrb[0].mxu0
    %v148 = vpop.f32.mrb[0].mxu0
    %v149 = vadd.f32 %v97, %v148
    %v150 = vpop.f32.mrb[0].mxu0
    %151 = vdwg.mxu0
    %v152 = vld [vmem:[%s6] sm:$0xff]
    %v153 = vld [vmem:[%s6 + $0x8] sm:$0xff]
    %v154 = vld [vmem:[%s2] sm:$0x1]
    %156 = vset.pattern.permute.xlu0 0
    %157 = vperm.xlu0 %156, %v152
    %v158 = vpop.permute.xlu0 %157
    %161 = vset.pattern.permute.xlu0 0
    %162 = vperm.xlu0 %161, %v153
    %v163 = vpop.permute.xlu0 %162
    %v166 = vlaneseq
    %v167 = vshrl.u32 %v166, 7
    %v168 = vsub.s32 0, %v167
    %v169 = vrot.slane %v154, %v168
    %v171 = vmul.f32 %v158, %v169
    %v172 = vmul.f32 %v163, %v169
    %v173 = vadd.f32 %v146, %v171
    %v174 = vadd.f32 %v149, %v172
    %v175 = vld [vmem:[%s7] sm:$0xff]
    %v176 = vld [vmem:[%s7 + $0x8] sm:$0xff]
    %v177 = vld [vmem:[%s3] sm:$0x1]
    %179 = vset.pattern.permute.xlu0 0
    %180 = vperm.xlu0 %179, %v175
    %v181 = vpop.permute.xlu0 %180
    %184 = vset.pattern.permute.xlu0 0
    %185 = vperm.xlu0 %184, %v176
    %v186 = vpop.permute.xlu0 %185
    %v189 = vlaneseq
    %v190 = vshrl.u32 %v189, 7
    %v191 = vsub.s32 0, %v190
    %v192 = vrot.slane %v177, %v191
    %v194 = vmul.f32 %v181, %v192
    %v195 = vmul.f32 %v186, %v192
    %v196 = vadd.f32 %v173, %v194
    %v197 = vadd.f32 %v174, %v195
    %v198 = vld [vmem:[%s8] sm:$0xff]
    %v199 = vld [vmem:[%s8 + $0x8] sm:$0xff]
    %201 = vset.pattern.permute.xlu0 0
    %202 = vperm.xlu0 %201, %v198
    %v203 = vpop.permute.xlu0 %202
    %206 = vset.pattern.permute.xlu0 0
    %207 = vperm.xlu0 %206, %v199
    %v208 = vpop.permute.xlu0 %207
    %v210 = vadd.f32 %v196, %v203
    %v211 = vadd.f32 %v197, %v208
    %v212 = vmax.f32 %v210, 0.0
    %v213 = vmax.f32 %v211, 0.0
    %v214 = vld [vmem:[%s9] sm:$0xf]
    %v215 = vld [vmem:[%s10] sm:$0xf]
    %217 = vset.pattern.permute.xlu0 0
    %218 = vperm.xlu0 %217, %v215
    %v219 = vpop.permute.xlu0 %218
    %vm221 = vcmask 130048
    %v223 = vsel %vm221, %v214, 0
    %225 = vmatprep.subr.mxu0 0.0
    %226 = vmatpush1.msra.mxu0 %v212
    %227 = vmatprep.subr.mxu0 0.0
    %228 = vmatpush1.msra.mxu0 %v213
    %229 = vmatprep.subr.mxu0 0.0
    %230 = vmatpush1.msra.mxu0 0.0
    %231 = vmatprep.subr.mxu0 0.0
    %232 = vmatpush1.msra.mxu0 0.0
    %233 = vmatprep.subr.mxu0 0.0
    %234 = vmatpush1.msra.mxu0 0.0
    %235 = vmatprep.subr.mxu0 0.0
    %236 = vmatpush1.msra.mxu0 0.0
    %237 = vmatprep.subr.mxu0 0.0
    %238 = vmatpush1.msra.mxu0 0.0
    %239 = vmatprep.subr.mxu0 0.0
    %240 = vmatpush1.msra.mxu0 0.0
    %241 = vmatprep.subr.mxu0 0.0
    %242 = vmatpush1.msra.mxu0 0.0
    %243 = vmatprep.subr.mxu0 0.0
    %244 = vmatpush1.msra.mxu0 0.0
    %245 = vmatprep.subr.mxu0 0.0
    %246 = vmatpush1.msra.mxu0 0.0
    %247 = vmatprep.subr.mxu0 0.0
    %248 = vmatpush1.msra.mxu0 0.0
    %249 = vmatprep.subr.mxu0 0.0
    %250 = vmatpush1.msra.mxu0 0.0
    %251 = vmatprep.subr.mxu0 0.0
    %252 = vmatpush1.msra.mxu0 0.0
    %253 = vmatprep.subr.mxu0 0.0
    %254 = vmatpush1.msra.mxu0 0.0
    %255 = vmatprep.subr.mxu0 0.0
    %256 = vmatpush1.msra.mxu0 0.0
    %257 = vmatprep.subr.mxu0 0.0
    %258 = vmatpush1.msra.mxu0 0.0
    %259 = vmatprep.subr.mxu0 0.0
    %260 = vmatpush1.msra.mxu0 0.0
    %261 = vmatprep.subr.mxu0 0.0
    %262 = vmatpush1.msra.mxu0 0.0
    %263 = vmatprep.subr.mxu0 0.0
    %264 = vmatpush1.msra.mxu0 0.0
    %265 = vmatprep.subr.mxu0 0.0
    %266 = vmatpush1.msra.mxu0 0.0
    %267 = vmatprep.subr.mxu0 0.0
    %268 = vmatpush1.msra.mxu0 0.0
    %269 = vmatprep.subr.mxu0 0.0
    %270 = vmatpush1.msra.mxu0 0.0
    %271 = vmatprep.subr.mxu0 0.0
    %272 = vmatpush1.msra.mxu0 0.0
    %273 = vmatprep.subr.mxu0 0.0
    %274 = vmatpush1.msra.mxu0 0.0
    %275 = vmatprep.subr.mxu0 0.0
    %276 = vmatpush1.msra.mxu0 0.0
    %277 = vmatprep.subr.mxu0 0.0
    %278 = vmatpush1.msra.mxu0 0.0
    %279 = vmatprep.subr.mxu0 0.0
    %280 = vmatpush1.msra.mxu0 0.0
    %281 = vmatprep.subr.mxu0 0.0
    %282 = vmatpush1.msra.mxu0 0.0
    %283 = vmatprep.subr.mxu0 0.0
    %284 = vmatpush1.msra.mxu0 0.0
    %285 = vmatprep.subr.mxu0 0.0
    %286 = vmatpush1.msra.mxu0 0.0
    %287 = vmatprep.subr.mxu0 0.0
    %288 = vmatpush1.msra.mxu0 0.0
    %289 = vmatprep.mubr.f32.mxu0 0.0
    %290 = vmatmul.mubr.f32.gmra.mrb[0].mxu0 %v223
    %v291 = vpop.f32.mrb[0].mxu0
    %v292 = vadd.f32 %v219, %v291
    %v293 = vpop.f32.mrb[0].mxu0
    %294 = vdwg.mxu0
    %295 = vst [vmem:[#allocation2] sm:$0xf] %v292
    // Predicated region
    $region46: #{tpu_custom_call.1} parent=1 // pred_check
      _
    $region47: #{tpu_custom_call.1} parent=1 // pred_check_branch
      %297 = sbr.rel (0) target = $region49
    $region48: #{tpu_custom_call.1} parent=1 // pred_region
      %s299 = ssub.s32 64, 64
      %300 = vsyncadd [#allocation3], %s299
      %s302 = sshll.u32 [#allocation2], 4
      %s303 = int_to_ptr.vmem [resolvable:$true] %s302
      %305 = dma.vmem_to_hbm [thread:$0]  %s303, 64, %s11, [#allocation3]
    $region49: #{tpu_custom_call.1} parent=1 // pred_fallthru
      _
    // Predicated region
    $region50: #{tpu_custom_call.1} parent=1 // pred_check
      _
    $region51: #{tpu_custom_call.1} parent=1 // pred_check_branch
      %307 = sbr.rel (0) target = $region53
    $region52: #{tpu_custom_call.1} parent=1 // pred_region
      %308 = dma.done [#allocation3], 64
    $region53: #{tpu_custom_call.1} parent=1 // pred_fallthru
      _
    %309 = vsyncpa [#allocation3], 1

</llo_original>
